<compile_context>
chip_gen: v5e
topology: v5e:2x2
jax: 0.10.0
libtpu: 0.0.40
codegen_flags: <defaults>
</compile_context>

<pallas_src>
import functools

import jax
import jax.numpy as jnp
from jax.experimental import pallas as pl
from jax.experimental.pallas import tpu as pltpu

# ---------------------------------------------------------------------------
# Head layout (concatenated along the last dim of the fused head matmul)
# ---------------------------------------------------------------------------
HEAD_DIMS = {
    "action_type_logits": 7,          # len(DRLAction)
    "agent_selection_logits": 20,
    "task_selection_logits": 100,
    "resource_allocation_logits": 11,
    "priority_logits": 5,
    "value": 1,
}
TOTAL_HEAD_DIM = sum(HEAD_DIMS.values())  # 144
PADDED_HEAD_DIM = 256                     # lane-dense (2 x 128) output width

HIDDEN_DIMS = [512, 256, 128]
LANE = 128


def _round_up(x, m):
    return ((x + m - 1) // m) * m


def _auto_batch_tile(batch):
    """Pick a batch tile.

    * B < 16:        one tiny grid step (pure latency path).
    * 16 <= B <= 1024: two grid steps (ceil(B/2) rounded up to 8) so the
      'parallel' batch axis can megacore-shard across v7x's two TensorCores;
      the extra ~0.35 us grid step is negligible on single-TC v5e/v6e.
    * B > 1024:      512-row tiles -- amortizes the ~600-cycle per-step
      overhead and fills the MXU; resident VMEM stays a few MiB everywhere.
    """
    if batch < 16:
        return max(8, _round_up(batch, 8))
    if batch <= 1024:
        return max(8, _round_up(pl.cdiv(batch, 2), 8))
    return 512


# ---------------------------------------------------------------------------
# Pallas kernel: 3-layer MLP (Linear + ReLU) + fused heads, all in VMEM.
# bf16 matmuls (f32 accumulation) on the MXU; bias/ReLU in f32 on the VPU;
# bf16 downcast fused into the activation; bf16 output store.
# ---------------------------------------------------------------------------
def _policy_kernel(x_ref, w1_ref, b1_ref, w2_ref, b2_ref, w3_ref, b3_ref,
                   wh_ref, bh_ref, out_ref):
    # layer 1
    h = jnp.dot(x_ref[...], w1_ref[...], preferred_element_type=jnp.float32)
    h = jnp.maximum(h + b1_ref[...], 0.0).astype(jnp.bfloat16)
    # layer 2
    h = jnp.dot(h, w2_ref[...], preferred_element_type=jnp.float32)
    h = jnp.maximum(h + b2_ref[...], 0.0).astype(jnp.bfloat16)
    # layer 3
    h = jnp.dot(h, w3_ref[...], preferred_element_type=jnp.float32)
    h = jnp.maximum(h + b3_ref[...], 0.0).astype(jnp.bfloat16)
    # fused output heads (144 real columns, zero-padded to 256 lanes); store
    # bf16 so the dominant HBM writeback stream is halved on v5e/v6e.
    out = jnp.dot(h, wh_ref[...], preferred_element_type=jnp.float32) + bh_ref[...]
    out_ref[...] = out.astype(out_ref.dtype)


# ---------------------------------------------------------------------------
# One-time weight preparation (hoisted out of the per-call path).
# ---------------------------------------------------------------------------
def prepare_params(params):
    """bf16 weight casts, head zero-pad 144 -> 256 output columns, and
    zero-pad of w1's input dim to a multiple of 128 (lane-dense x tiles)."""
    obs_dim = params["w1"].shape[0]
    obs_pad = _round_up(obs_dim, LANE)
    head_pad = PADDED_HEAD_DIM - TOTAL_HEAD_DIM
    return {
        "w1": jnp.pad(params["w1"],
                      ((0, obs_pad - obs_dim), (0, 0))).astype(jnp.bfloat16),
        "w2": params["w2"].astype(jnp.bfloat16),
        "w3": params["w3"].astype(jnp.bfloat16),
        "wh": jnp.pad(params["wh"],
                      ((0, 0), (0, head_pad))).astype(jnp.bfloat16),
        "b1": params["b1"].astype(jnp.float32),
        "b2": params["b2"].astype(jnp.float32),
        "b3": params["b3"].astype(jnp.float32),
        "bh": jnp.pad(params["bh"],
                      ((0, 0), (0, head_pad))).astype(jnp.float32),
    }


# ---------------------------------------------------------------------------
# Forward wrapper.
# ---------------------------------------------------------------------------
@functools.partial(jax.jit, static_argnames=("batch_tile",))
def drl_policy_forward(x, prepped, batch_tile=None):
    """Run the DRLPolicyNetwork forward pass with a single Pallas kernel.

    Args:
      x: (B, observation_dim) float32 observations.
      prepped: dict from prepare_params() (bf16 weights, padded heads).
      batch_tile: rows of `x` processed per grid step (auto if None).

    Returns:
      dict matching the PyTorch module's forward() output (f32 arrays).
    """
    B, obs_dim = x.shape
    obs_pad = prepped["w1"].shape[0]
    if batch_tile is None:
        batch_tile = _auto_batch_tile(B)
    batch_tile = max(8, _round_up(int(batch_tile), 8))

    # Pad the batch so the grid divides evenly (padded rows are zeros and the
    # corresponding outputs are sliced away below).  x is cast to bf16 here
    # (halves its HBM read, removes the in-kernel cast) and the observation
    # dim is zero-padded to match the pre-padded w1 (lane-dense loads).
    B_pad = _round_up(B, batch_tile)
    x_pad = jnp.pad(x.astype(jnp.bfloat16),
                    ((0, B_pad - B), (0, obs_pad - obs_dim)))

    w1, w2, w3, wh = prepped["w1"], prepped["w2"], prepped["w3"], prepped["wh"]
    b1, b2, b3, bh = prepped["b1"], prepped["b2"], prepped["b3"], prepped["bh"]

    grid = (B_pad // batch_tile,)

    # Inputs: x is tiled along the batch; weights/biases are replicated
    # (full-array blocks, constant index_map) so they stay resident in VMEM.
    # (pl.Buffered(1) on the weight specs would save a second ~0.5 MiB copy;
    # omitted here as pure hygiene -- total footprint is a few MiB.)
    def full(arr):
        return pl.BlockSpec(arr.shape, lambda i, n=arr.ndim: (0,) * n)

    flops = 2 * B_pad * (obs_pad * HIDDEN_DIMS[0]
                         + HIDDEN_DIMS[0] * HIDDEN_DIMS[1]
                         + HIDDEN_DIMS[1] * HIDDEN_DIMS[2]
                         + HIDDEN_DIMS[2] * PADDED_HEAD_DIM)
    bytes_accessed = (
        x_pad.size * 2
        + (w1.size + w2.size + w3.size + wh.size) * 2
        + (b1.size + b2.size + b3.size + bh.size) * 4
        + B_pad * PADDED_HEAD_DIM * 2
    )

    out = pl.pallas_call(
        _policy_kernel,
        out_shape=jax.ShapeDtypeStruct((B_pad, PADDED_HEAD_DIM), jnp.bfloat16),
        grid_spec=pltpu.PrefetchScalarGridSpec(
            num_scalar_prefetch=0,
            grid=grid,
            in_specs=[
                pl.BlockSpec((batch_tile, obs_pad), lambda i: (i, 0)),
                full(w1), full(b1),
                full(w2), full(b2),
                full(w3), full(b3),
                full(wh), full(bh),
            ],
            out_specs=pl.BlockSpec((batch_tile, PADDED_HEAD_DIM),
                                   lambda i: (i, 0)),
        ),
        compiler_params=pltpu.CompilerParams(
            dimension_semantics=("parallel",)),
        cost_estimate=pl.CostEstimate(flops=flops, transcendentals=0,
                                      bytes_accessed=bytes_accessed),
    )(x_pad, w1, b1, w2, b2, w3, b3, wh, bh)

    # Drop batch padding + slice the fused head output apart, upcasting each
    # head back to f32 (plain-JAX glue, fuses under jit).
    out = out[:B]
    result = {}
    off = 0
    for name, dim in HEAD_DIMS.items():
        result[name] = out[:, off:off + dim].astype(jnp.float32)
        off += dim
    return result


# ---------------------------------------------------------------------------
# Deterministic parameter init (Xavier-uniform weights, zero biases),
# mirroring the PyTorch _init_weights.  Stored in f32; prepare_params casts.
# ---------------------------------------------------------------------------
def _xavier_uniform(key, fan_in, fan_out):
    limit = jnp.sqrt(6.0 / (fan_in + fan_out))
    return jax.random.uniform(key, (fan_in, fan_out), jnp.float32,
                              minval=-limit, maxval=limit)


def init_params(key, observation_dim):
    keys = jax.random.split(key, 3 + len(HEAD_DIMS))
    params = {}
    in_dim = observation_dim
    for idx, h in enumerate(HIDDEN_DIMS, start=1):
        params[f"w{idx}"] = _xavier_uniform(keys[idx - 1], in_dim, h)
        params[f"b{idx}"] = jnp.zeros((1, h), jnp.float32)
        in_dim = h
    # Fused heads: each head gets its own Xavier init (per-head fan_out),
    # then they are concatenated along the output axis.
    head_ws = []
    for k, (_, dim) in zip(keys[3:], HEAD_DIMS.items()):
        head_ws.append(_xavier_uniform(k, in_dim, dim))
    params["wh"] = jnp.concatenate(head_ws, axis=1)
    params["bh"] = jnp.zeros((1, TOTAL_HEAD_DIM), jnp.float32)
    return params


# ---------------------------------------------------------------------------
# Pure-JAX f32 reference for a correctness check.
# ---------------------------------------------------------------------------
def reference_forward(x, params):
    h = jnp.maximum(x @ params["w1"] + params["b1"], 0.0)
    h = jnp.maximum(h @ params["w2"] + params["b2"], 0.0)
    h = jnp.maximum(h @ params["w3"] + params["b3"], 0.0)
    out = h @ params["wh"] + params["bh"]
    result = {}
    off = 0
    for name, dim in HEAD_DIMS.items():
        result[name] = out[:, off:off + dim]
        off += dim
    return result


def _check(out, ref):
    # Kernel uses bf16 matmuls / intermediates / output with f32 accumulation
    # -> relaxed tolerance relative to the f32 reference.
    for name in HEAD_DIMS:
        assert out[name].shape == ref[name].shape, name
        err = float(jnp.max(jnp.abs(out[name] - ref[name])))
        scale = float(jnp.max(jnp.abs(ref[name]))) + 1.0
        assert err <= 5e-2 * scale, f"{name} mismatch: {err} (scale {scale})"


if __name__ == "__main__":
    key = jax.random.PRNGKey(0)
    obs_key, obs_key2, param_key = jax.random.split(key, 3)

    observation_dim = 64
    params = init_params(param_key, observation_dim)
    prepped = prepare_params(params)   # one-time weight prep (bf16 + padding)

    # Small latency-path batch (single grid step).
    x_small = jax.random.normal(obs_key, (8, observation_dim), jnp.float32)
    out_small = drl_policy_forward(x_small, prepped)
    jax.block_until_ready(out_small)
    _check(out_small, reference_forward(x_small, params))

    # Non-multiple batch exercising the 2-step tiled path + batch padding.
    x_big = jax.random.normal(obs_key2, (300, observation_dim), jnp.float32)
    out_big = drl_policy_forward(x_big, prepped)
    jax.block_until_ready(out_big)
    _check(out_big, reference_forward(x_big, params))

    print("KERNEL_OK")
</pallas_src>

<mosaic_0001>
module attributes {stable_mosaic.version = 11 : i64} {
  func.func @_policy_kernel(%arg0: i32, %arg1: memref<8x128xbf16, #tpu.memory_space<vmem>>, %arg2: memref<128x512xbf16, #tpu.memory_space<vmem>>, %arg3: memref<1x512xf32, #tpu.memory_space<vmem>>, %arg4: memref<512x256xbf16, #tpu.memory_space<vmem>>, %arg5: memref<1x256xf32, #tpu.memory_space<vmem>>, %arg6: memref<256x128xbf16, #tpu.memory_space<vmem>>, %arg7: memref<1x128xf32, #tpu.memory_space<vmem>>, %arg8: memref<128x256xbf16, #tpu.memory_space<vmem>>, %arg9: memref<1x256xf32, #tpu.memory_space<vmem>>, %arg10: memref<8x256xbf16, #tpu.memory_space<vmem>>) attributes {dimension_semantics = [#tpu.dimension_semantics<parallel>], iteration_bounds = array<i64: 1>, scalar_prefetch = 0 : i64, scratch_operands = 0 : i64, tpu.core_type = #tpu.core_type<tc>, window_params = [{transform_indices = @transform_0, window_bounds = array<i64: 8, 128>}, {pipeline_mode = #tpu.pipeline_mode<synchronous>, transform_indices = @transform_1, window_bounds = array<i64: 128, 512>}, {pipeline_mode = #tpu.pipeline_mode<synchronous>, transform_indices = @transform_2, window_bounds = array<i64: 1, 512>}, {pipeline_mode = #tpu.pipeline_mode<synchronous>, transform_indices = @transform_3, window_bounds = array<i64: 512, 256>}, {pipeline_mode = #tpu.pipeline_mode<synchronous>, transform_indices = @transform_4, window_bounds = array<i64: 1, 256>}, {pipeline_mode = #tpu.pipeline_mode<synchronous>, transform_indices = @transform_5, window_bounds = array<i64: 256, 128>}, {pipeline_mode = #tpu.pipeline_mode<synchronous>, transform_indices = @transform_6, window_bounds = array<i64: 1, 128>}, {pipeline_mode = #tpu.pipeline_mode<synchronous>, transform_indices = @transform_7, window_bounds = array<i64: 128, 256>}, {pipeline_mode = #tpu.pipeline_mode<synchronous>, transform_indices = @transform_8, window_bounds = array<i64: 1, 256>}, {transform_indices = @transform_9, window_bounds = array<i64: 8, 256>}]} {
    %c0 = arith.constant 0 : index
    %c0_0 = arith.constant 0 : index
    %0 = vector.load %arg1[%c0, %c0_0] : memref<8x128xbf16, #tpu.memory_space<vmem>>, vector<8x128xbf16>
    %c0_1 = arith.constant 0 : index
    %c0_2 = arith.constant 0 : index
    %1 = vector.load %arg2[%c0_1, %c0_2] : memref<128x512xbf16, #tpu.memory_space<vmem>>, vector<128x512xbf16>
    %cst = arith.constant dense<0.000000e+00> : vector<8x512xf32>
    %2 = tpu.matmul %0, %1, %cst {dimension_numbers = #tpu.dot_dimension_numbers<[1], [0], [0], [1], [0, 0, 1, 1], [], []>} : vector<8x128xbf16>, vector<128x512xbf16>, vector<8x512xf32> -> vector<8x512xf32>
    %c0_3 = arith.constant 0 : index
    %c0_4 = arith.constant 0 : index
    %3 = vector.load %arg3[%c0_3, %c0_4] : memref<1x512xf32, #tpu.memory_space<vmem>>, vector<1x512xf32>
    %4 = vector.broadcast %3 : vector<1x512xf32> to vector<8x512xf32>
    %5 = arith.addf %2, %4 : vector<8x512xf32>
    %cst_5 = arith.constant 0.000000e+00 : f32
    %6 = vector.broadcast %cst_5 : f32 to vector<8x512xf32>
    %7 = arith.maximumf %5, %6 : vector<8x512xf32>
    %8 = arith.truncf %7 : vector<8x512xf32> to vector<8x512xbf16>
    %c0_6 = arith.constant 0 : index
    %c0_7 = arith.constant 0 : index
    %9 = vector.load %arg4[%c0_6, %c0_7] : memref<512x256xbf16, #tpu.memory_space<vmem>>, vector<512x256xbf16>
    %cst_8 = arith.constant dense<0.000000e+00> : vector<8x256xf32>
    %10 = tpu.matmul %8, %9, %cst_8 {dimension_numbers = #tpu.dot_dimension_numbers<[1], [0], [0], [1], [0, 0, 1, 1], [], []>} : vector<8x512xbf16>, vector<512x256xbf16>, vector<8x256xf32> -> vector<8x256xf32>
    %c0_9 = arith.constant 0 : index
    %c0_10 = arith.constant 0 : index
    %11 = vector.load %arg5[%c0_9, %c0_10] : memref<1x256xf32, #tpu.memory_space<vmem>>, vector<1x256xf32>
    %12 = vector.broadcast %11 : vector<1x256xf32> to vector<8x256xf32>
    %13 = arith.addf %10, %12 : vector<8x256xf32>
    %cst_11 = arith.constant 0.000000e+00 : f32
    %14 = vector.broadcast %cst_11 : f32 to vector<8x256xf32>
    %15 = arith.maximumf %13, %14 : vector<8x256xf32>
    %16 = arith.truncf %15 : vector<8x256xf32> to vector<8x256xbf16>
    %c0_12 = arith.constant 0 : index
    %c0_13 = arith.constant 0 : index
    %17 = vector.load %arg6[%c0_12, %c0_13] : memref<256x128xbf16, #tpu.memory_space<vmem>>, vector<256x128xbf16>
    %cst_14 = arith.constant dense<0.000000e+00> : vector<8x128xf32>
    %18 = tpu.matmul %16, %17, %cst_14 {dimension_numbers = #tpu.dot_dimension_numbers<[1], [0], [0], [1], [0, 0, 1, 1], [], []>} : vector<8x256xbf16>, vector<256x128xbf16>, vector<8x128xf32> -> vector<8x128xf32>
    %c0_15 = arith.constant 0 : index
    %c0_16 = arith.constant 0 : index
    %19 = vector.load %arg7[%c0_15, %c0_16] : memref<1x128xf32, #tpu.memory_space<vmem>>, vector<1x128xf32>
    %20 = vector.broadcast %19 : vector<1x128xf32> to vector<8x128xf32>
    %21 = arith.addf %18, %20 : vector<8x128xf32>
    %cst_17 = arith.constant 0.000000e+00 : f32
    %22 = vector.broadcast %cst_17 : f32 to vector<8x128xf32>
    %23 = arith.maximumf %21, %22 : vector<8x128xf32>
    %24 = arith.truncf %23 : vector<8x128xf32> to vector<8x128xbf16>
    %c0_18 = arith.constant 0 : index
    %c0_19 = arith.constant 0 : index
    %25 = vector.load %arg8[%c0_18, %c0_19] : memref<128x256xbf16, #tpu.memory_space<vmem>>, vector<128x256xbf16>
    %cst_20 = arith.constant dense<0.000000e+00> : vector<8x256xf32>
    %26 = tpu.matmul %24, %25, %cst_20 {dimension_numbers = #tpu.dot_dimension_numbers<[1], [0], [0], [1], [0, 0, 1, 1], [], []>} : vector<8x128xbf16>, vector<128x256xbf16>, vector<8x256xf32> -> vector<8x256xf32>
    %c0_21 = arith.constant 0 : index
    %c0_22 = arith.constant 0 : index
    %27 = vector.load %arg9[%c0_21, %c0_22] : memref<1x256xf32, #tpu.memory_space<vmem>>, vector<1x256xf32>
    %28 = vector.broadcast %27 : vector<1x256xf32> to vector<8x256xf32>
    %29 = arith.addf %26, %28 : vector<8x256xf32>
    %30 = arith.truncf %29 : vector<8x256xf32> to vector<8x256xbf16>
    %c0_23 = arith.constant 0 : index
    %c0_24 = arith.constant 0 : index
    %31 = vector.load %arg10[%c0_23, %c0_24] : memref<8x256xbf16, #tpu.memory_space<vmem>>, vector<8x256xbf16>
    tpu.vector_store %arg10[%c0_23, %c0_24], %30 {strides = array<i32>} : memref<8x256xbf16, #tpu.memory_space<vmem>>, vector<8x256xbf16>,
    return
  }
  func.func @transform_0(%arg0: i32) -> (i32, i32) {
    %c0_i32 = arith.constant 0 : i32
    %c0_i32_0 = arith.constant 0 : i32
    return %arg0, %c0_i32 : i32, i32
  }
  func.func @transform_1(%arg0: i32) -> (i32, i32) {
    %c0_i32 = arith.constant 0 : i32
    %c0_i32_0 = arith.constant 0 : i32
    %c0_i32_1 = arith.constant 0 : i32
    return %c0_i32, %c0_i32_0 : i32, i32
  }
  func.func @transform_2(%arg0: i32) -> (i32, i32) {
    %c0_i32 = arith.constant 0 : i32
    %c0_i32_0 = arith.constant 0 : i32
    %c0_i32_1 = arith.constant 0 : i32
    return %c0_i32, %c0_i32_0 : i32, i32
  }
  func.func @transform_3(%arg0: i32) -> (i32, i32) {
    %c0_i32 = arith.constant 0 : i32
    %c0_i32_0 = arith.constant 0 : i32
    %c0_i32_1 = arith.constant 0 : i32
    return %c0_i32, %c0_i32_0 : i32, i32
  }
  func.func @transform_4(%arg0: i32) -> (i32, i32) {
    %c0_i32 = arith.constant 0 : i32
    %c0_i32_0 = arith.constant 0 : i32
    %c0_i32_1 = arith.constant 0 : i32
    return %c0_i32, %c0_i32_0 : i32, i32
  }
  func.func @transform_5(%arg0: i32) -> (i32, i32) {
    %c0_i32 = arith.constant 0 : i32
    %c0_i32_0 = arith.constant 0 : i32
    %c0_i32_1 = arith.constant 0 : i32
    return %c0_i32, %c0_i32_0 : i32, i32
  }
  func.func @transform_6(%arg0: i32) -> (i32, i32) {
    %c0_i32 = arith.constant 0 : i32
    %c0_i32_0 = arith.constant 0 : i32
    %c0_i32_1 = arith.constant 0 : i32
    return %c0_i32, %c0_i32_0 : i32, i32
  }
  func.func @transform_7(%arg0: i32) -> (i32, i32) {
    %c0_i32 = arith.constant 0 : i32
    %c0_i32_0 = arith.constant 0 : i32
    %c0_i32_1 = arith.constant 0 : i32
    return %c0_i32, %c0_i32_0 : i32, i32
  }
  func.func @transform_8(%arg0: i32) -> (i32, i32) {
    %c0_i32 = arith.constant 0 : i32
    %c0_i32_0 = arith.constant 0 : i32
    %c0_i32_1 = arith.constant 0 : i32
    return %c0_i32, %c0_i32_0 : i32, i32
  }
  func.func @transform_9(%arg0: i32) -> (i32, i32) {
    %c0_i32 = arith.constant 0 : i32
    %c0_i32_0 = arith.constant 0 : i32
    return %arg0, %c0_i32 : i32, i32
  }
}

</mosaic_0001>

<llo_original>
// kernel: drl_policy_forward.1
$region0: #{drl_policy_forward.1}
  #allocation0 [shape = 'u32[]', space=smem, size = 0x4, offset = 0x4, fixed_abs, tag = 'smem constant byte address 0x4 - core index']
  #allocation1 [shape = 'u32[72,128]{1,0:T(1,128)}', space=vmem, size = 0x9000, scoped, tag = 'internal scratch']
  %s0 = inlined_call_operand.vmem [shape: bf16[8,128], index: 0, kind: input, shape index: {}]
  %s1 = inlined_call_operand.hbm [shape: bf16[128,512], index: 1, kind: input, shape index: {}]
  %s2 = inlined_call_operand.vmem [shape: f32[1,512], index: 2, kind: input, shape index: {}]
  %s3 = inlined_call_operand.hbm [shape: bf16[512,256], index: 3, kind: input, shape index: {}]
  %s4 = inlined_call_operand.vmem [shape: f32[1,256], index: 4, kind: input, shape index: {}]
  %s5 = inlined_call_operand.hbm [shape: bf16[256,128], index: 5, kind: input, shape index: {}]
  %s6 = inlined_call_operand.vmem [shape: f32[1,128], index: 6, kind: input, shape index: {}]
  %s7 = inlined_call_operand.hbm [shape: bf16[128,256], index: 7, kind: input, shape index: {}]
  %s8 = inlined_call_operand.vmem [shape: f32[1,256], index: 8, kind: input, shape index: {}]
  %s9 = inlined_call_operand.vmem [shape: bf16[8,256], index: 9, kind: output, shape index: {}]
  %s10 = sld [smem:[#allocation0]]
  $region62: #{drl_policy_forward.1} parent=0
    _
  %s12 = ssub.s32 1, %s10
  %s13 = scalar_select 0, %s12, %s10
  $region1: #{drl_policy_forward.1} parent=0
    #allocation2 [shape = 'u8[131072]{0}', space=vmem, size = 0x20000, scoped, tag = 'input window, operand 1, single buffered']
    #allocation3 [shape = 's32[1]{0}', space=sflag, size = 0x4, scoped, tag = 'scoped memory for drl_policy_forward.1']
    #allocation4 [shape = 'u8[262144]{0}', space=vmem, size = 0x40000, scoped, tag = 'input window, operand 3, single buffered']
    #allocation5 [shape = 's32[1]{0}', space=sflag, size = 0x4, scoped, tag = 'scoped memory for drl_policy_forward.1']
    #allocation6 [shape = 'u8[65536]{0}', space=vmem, size = 0x10000, scoped, tag = 'input window, operand 5, single buffered']
    #allocation7 [shape = 'u8[65536]{0}', space=vmem, size = 0x10000, scoped, tag = 'input window, operand 7, single buffered']
    #allocation8 [shape = 's32[1]{0}', space=sflag, size = 0x4, scoped, tag = 'scoped memory for drl_policy_forward.1']
    %14 = vsyncpa [#allocation3], 0
    %15 = vsyncpa [#allocation5], 0
    %16 = vsyncpa [#allocation8], 0
    // Predicated region
    $region2: #{drl_policy_forward.1} parent=1 // pred_check
      _
    $region3: #{drl_policy_forward.1} parent=1 // pred_check_branch
      %18 = sbr.rel (0) target = $region5
    $region4: #{drl_policy_forward.1} parent=1 // pred_region
      _
    $region5: #{drl_policy_forward.1} parent=1 // pred_fallthru
      _
    // Predicated region
    $region6: #{drl_policy_forward.1} parent=1 // pred_check
      _
    $region7: #{drl_policy_forward.1} parent=1 // pred_check_branch
      %20 = sbr.rel (0) target = $region9
    $region8: #{drl_policy_forward.1} parent=1 // pred_region
      %22 = vsyncadd [#allocation3], 0
      %s23 = sshll.u32 %s1, 4
      %s24 = int_to_ptr.hbm [resolvable:$true] %s23
      %s25 = sshll.u32 [#allocation2], 4
      %s26 = int_to_ptr.vmem [resolvable:$true] %s25
      %31 = dma.hbm_to_vmem [thread:$0]  %s24, 4096, %s26, [#allocation3], 256, 256, 16
    $region9: #{drl_policy_forward.1} parent=1 // pred_fallthru
      _
    // Predicated region
    $region10: #{drl_policy_forward.1} parent=1 // pred_check
      _
    $region11: #{drl_policy_forward.1} parent=1 // pred_check_branch
      %33 = sbr.rel (0) target = $region13
    $region12: #{drl_policy_forward.1} parent=1 // pred_region
      _
    $region13: #{drl_policy_forward.1} parent=1 // pred_fallthru
      _
    // Predicated region
    $region14: #{drl_policy_forward.1} parent=1 // pred_check
      _
    $region15: #{drl_policy_forward.1} parent=1 // pred_check_branch
      %35 = sbr.rel (0) target = $region17
    $region16: #{drl_policy_forward.1} parent=1 // pred_region
      %37 = vsyncadd [#allocation5], 0
      %s38 = sshll.u32 %s3, 4
      %s39 = int_to_ptr.hbm [resolvable:$true] %s38
      %s40 = sshll.u32 [#allocation4], 4
      %s41 = int_to_ptr.vmem [resolvable:$true] %s40
      %46 = dma.hbm_to_vmem [thread:$0]  %s39, 8192, %s41, [#allocation5], 128, 128, 8
    $region17: #{drl_policy_forward.1} parent=1 // pred_fallthru
      _
    // Predicated region
    $region18: #{drl_policy_forward.1} parent=1 // pred_check
      _
    $region19: #{drl_policy_forward.1} parent=1 // pred_check_branch
      %48 = sbr.rel (0) target = $region21
    $region20: #{drl_policy_forward.1} parent=1 // pred_region
      _
    $region21: #{drl_policy_forward.1} parent=1 // pred_fallthru
      _
    // Predicated region
    $region22: #{drl_policy_forward.1} parent=1 // pred_check
      _
    $region23: #{drl_policy_forward.1} parent=1 // pred_check_branch
      %50 = sbr.rel (0) target = $region25
    $region24: #{drl_policy_forward.1} parent=1 // pred_region
      %52 = vsyncadd [#allocation5], 0
      %s53 = sshll.u32 %s5, 4
      %s54 = int_to_ptr.hbm [resolvable:$true] %s53
      %s55 = sshll.u32 [#allocation6], 4
      %s56 = int_to_ptr.vmem [resolvable:$true] %s55
      %61 = dma.hbm_to_vmem [thread:$0]  %s54, 2048, %s56, [#allocation5], 64, 64, 4
    $region25: #{drl_policy_forward.1} parent=1 // pred_fallthru
      _
    // Predicated region
    $region26: #{drl_policy_forward.1} parent=1 // pred_check
      _
    $region27: #{drl_policy_forward.1} parent=1 // pred_check_branch
      %63 = sbr.rel (0) target = $region29
    $region28: #{drl_policy_forward.1} parent=1 // pred_region
      _
    $region29: #{drl_policy_forward.1} parent=1 // pred_fallthru
      _
    // Predicated region
    $region30: #{drl_policy_forward.1} parent=1 // pred_check
      _
    $region31: #{drl_policy_forward.1} parent=1 // pred_check_branch
      %65 = sbr.rel (0) target = $region33
    $region32: #{drl_policy_forward.1} parent=1 // pred_region
      %67 = vsyncadd [#allocation8], 0
      %s68 = sshll.u32 %s7, 4
      %s69 = int_to_ptr.hbm [resolvable:$true] %s68
      %s70 = sshll.u32 [#allocation7], 4
      %s71 = int_to_ptr.vmem [resolvable:$true] %s70
      %76 = dma.hbm_to_vmem [thread:$0]  %s69, 2048, %s71, [#allocation8], 128, 128, 8
    $region33: #{drl_policy_forward.1} parent=1 // pred_fallthru
      _
    // Predicated region
    $region34: #{drl_policy_forward.1} parent=1 // pred_check
      _
    $region35: #{drl_policy_forward.1} parent=1 // pred_check_branch
      %78 = sbr.rel (0) target = $region37
    $region36: #{drl_policy_forward.1} parent=1 // pred_region
      _
    $region37: #{drl_policy_forward.1} parent=1 // pred_fallthru
      _
    // Predicated region
    $region38: #{drl_policy_forward.1} parent=1 // pred_check
      _
    $region39: #{drl_policy_forward.1} parent=1 // pred_check_branch
      %80 = sbr.rel (0) target = $region41
    $region40: #{drl_policy_forward.1} parent=1 // pred_region
      %82 = dma.done [#allocation3], 4096
    $region41: #{drl_policy_forward.1} parent=1 // pred_fallthru
      _
    // Predicated region
    $region42: #{drl_policy_forward.1} parent=1 // pred_check
      _
    $region43: #{drl_policy_forward.1} parent=1 // pred_check_branch
      %84 = sbr.rel (0) target = $region45
    $region44: #{drl_policy_forward.1} parent=1 // pred_region
      %86 = dma.done [#allocation5], 8192
    $region45: #{drl_policy_forward.1} parent=1 // pred_fallthru
      _
    // Predicated region
    $region46: #{drl_policy_forward.1} parent=1 // pred_check
      _
    $region47: #{drl_policy_forward.1} parent=1 // pred_check_branch
      %88 = sbr.rel (0) target = $region49
    $region48: #{drl_policy_forward.1} parent=1 // pred_region
      %90 = dma.done [#allocation5], 2048
    $region49: #{drl_policy_forward.1} parent=1 // pred_fallthru
      _
    // Predicated region
    $region50: #{drl_policy_forward.1} parent=1 // pred_check
      _
    $region51: #{drl_policy_forward.1} parent=1 // pred_check_branch
      %92 = sbr.rel (0) target = $region53
    $region52: #{drl_policy_forward.1} parent=1 // pred_region
      %94 = dma.done [#allocation8], 2048
    $region53: #{drl_policy_forward.1} parent=1 // pred_fallthru
      _
    %v95 = vld [vmem:[%s0] sm:$0xf]
    %v96 = vld [vmem:[#allocation2] sm:$0xff]
    %v97 = vld [vmem:[#allocation2 + $0x8] sm:$0xff]
    %v98 = vld [vmem:[#allocation2 + $0x10] sm:$0xff]
    %v99 = vld [vmem:[#allocation2 + $0x18] sm:$0xff]
    %v100 = vld [vmem:[#allocation2 + $0x20] sm:$0xff]
    %v101 = vld [vmem:[#allocation2 + $0x28] sm:$0xff]
    %v102 = vld [vmem:[#allocation2 + $0x30] sm:$0xff]
    %v103 = vld [vmem:[#allocation2 + $0x38] sm:$0xff]
    %v104 = vld [vmem:[#allocation2 + $0x40] sm:$0xff]
    %v105 = vld [vmem:[#allocation2 + $0x48] sm:$0xff]
    %v106 = vld [vmem:[#allocation2 + $0x50] sm:$0xff]
    %v107 = vld [vmem:[#allocation2 + $0x58] sm:$0xff]
    %v108 = vld [vmem:[#allocation2 + $0x60] sm:$0xff]
    %v109 = vld [vmem:[#allocation2 + $0x68] sm:$0xff]
    %v110 = vld [vmem:[#allocation2 + $0x70] sm:$0xff]
    %v111 = vld [vmem:[#allocation2 + $0x78] sm:$0xff]
    %v112 = vld [vmem:[#allocation2 + $0x80] sm:$0xff]
    %v113 = vld [vmem:[#allocation2 + $0x88] sm:$0xff]
    %v114 = vld [vmem:[#allocation2 + $0x90] sm:$0xff]
    %v115 = vld [vmem:[#allocation2 + $0x98] sm:$0xff]
    %v116 = vld [vmem:[#allocation2 + $0xa0] sm:$0xff]
    %v117 = vld [vmem:[#allocation2 + $0xa8] sm:$0xff]
    %v118 = vld [vmem:[#allocation2 + $0xb0] sm:$0xff]
    %v119 = vld [vmem:[#allocation2 + $0xb8] sm:$0xff]
    %v120 = vld [vmem:[#allocation2 + $0xc0] sm:$0xff]
    %v121 = vld [vmem:[#allocation2 + $0xc8] sm:$0xff]
    %v122 = vld [vmem:[#allocation2 + $0xd0] sm:$0xff]
    %v123 = vld [vmem:[#allocation2 + $0xd8] sm:$0xff]
    %v124 = vld [vmem:[#allocation2 + $0xe0] sm:$0xff]
    %v125 = vld [vmem:[#allocation2 + $0xe8] sm:$0xff]
    %v126 = vld [vmem:[#allocation2 + $0xf0] sm:$0xff]
    %v127 = vld [vmem:[#allocation2 + $0xf8] sm:$0xff]
    %v128 = vld [vmem:[%s2] sm:$0xf]
    %v130 = vperm.slane %v128, 0
    %v131 = vperm.slane %v128, 1
    %v132 = vperm.slane %v128, 2
    %v133 = vperm.slane %v128, 3
    %v170 = vunpack.c.l.b16 %v96
    %v171 = vunpack.c.h.b16 %v96
    %v172 = vunpack.c.l.b16 %v97
    %v173 = vunpack.c.h.b16 %v97
    %v174 = vunpack.c.l.b16 %v98
    %v175 = vunpack.c.h.b16 %v98
    %v176 = vunpack.c.l.b16 %v99
    %v177 = vunpack.c.h.b16 %v99
    %v178 = vunpack.c.l.b16 %v100
    %v179 = vunpack.c.h.b16 %v100
    %v180 = vunpack.c.l.b16 %v101
    %v181 = vunpack.c.h.b16 %v101
    %v182 = vunpack.c.l.b16 %v102
    %v183 = vunpack.c.h.b16 %v102
    %v184 = vunpack.c.l.b16 %v103
    %v185 = vunpack.c.h.b16 %v103
    %v186 = vunpack.c.l.b16 %v104
    %v187 = vunpack.c.h.b16 %v104
    %v188 = vunpack.c.l.b16 %v105
    %v189 = vunpack.c.h.b16 %v105
    %v190 = vunpack.c.l.b16 %v106
    %v191 = vunpack.c.h.b16 %v106
    %v192 = vunpack.c.l.b16 %v107
    %v193 = vunpack.c.h.b16 %v107
    %v194 = vunpack.c.l.b16 %v108
    %v195 = vunpack.c.h.b16 %v108
    %v196 = vunpack.c.l.b16 %v109
    %v197 = vunpack.c.h.b16 %v109
    %v198 = vunpack.c.l.b16 %v110
    %v199 = vunpack.c.h.b16 %v110
    %v200 = vunpack.c.l.b16 %v111
    %v201 = vunpack.c.h.b16 %v111
    %v202 = vunpack.c.l.b16 %v112
    %v203 = vunpack.c.h.b16 %v112
    %v204 = vunpack.c.l.b16 %v113
    %v205 = vunpack.c.h.b16 %v113
    %v206 = vunpack.c.l.b16 %v114
    %v207 = vunpack.c.h.b16 %v114
    %v208 = vunpack.c.l.b16 %v115
    %v209 = vunpack.c.h.b16 %v115
    %v210 = vunpack.c.l.b16 %v116
    %v211 = vunpack.c.h.b16 %v116
    %v212 = vunpack.c.l.b16 %v117
    %v213 = vunpack.c.h.b16 %v117
    %v214 = vunpack.c.l.b16 %v118
    %v215 = vunpack.c.h.b16 %v118
    %v216 = vunpack.c.l.b16 %v119
    %v217 = vunpack.c.h.b16 %v119
    %v218 = vunpack.c.l.b16 %v120
    %v219 = vunpack.c.h.b16 %v120
    %v220 = vunpack.c.l.b16 %v121
    %v221 = vunpack.c.h.b16 %v121
    %v222 = vunpack.c.l.b16 %v122
    %v223 = vunpack.c.h.b16 %v122
    %v224 = vunpack.c.l.b16 %v123
    %v225 = vunpack.c.h.b16 %v123
    %v226 = vunpack.c.l.b16 %v124
    %v227 = vunpack.c.h.b16 %v124
    %v228 = vunpack.c.l.b16 %v125
    %v229 = vunpack.c.h.b16 %v125
    %v230 = vunpack.c.l.b16 %v126
    %v231 = vunpack.c.h.b16 %v126
    %v232 = vunpack.c.l.b16 %v127
    %v233 = vunpack.c.h.b16 %v127
    %v234 = vpack.c.b16 %v174, %v170
    %v235 = vpack.c.b16 %v175, %v171
    %v236 = vpack.c.b16 %v176, %v172
    %v237 = vpack.c.b16 %v177, %v173
    %v238 = vpack.c.b16 %v182, %v178
    %v239 = vpack.c.b16 %v183, %v179
    %v240 = vpack.c.b16 %v184, %v180
    %v241 = vpack.c.b16 %v185, %v181
    %v242 = vpack.c.b16 %v190, %v186
    %v243 = vpack.c.b16 %v191, %v187
    %v244 = vpack.c.b16 %v192, %v188
    %v245 = vpack.c.b16 %v193, %v189
    %v246 = vpack.c.b16 %v198, %v194
    %v247 = vpack.c.b16 %v199, %v195
    %v248 = vpack.c.b16 %v200, %v196
    %v249 = vpack.c.b16 %v201, %v197
    %v250 = vpack.c.b16 %v206, %v202
    %v251 = vpack.c.b16 %v207, %v203
    %v252 = vpack.c.b16 %v208, %v204
    %v253 = vpack.c.b16 %v209, %v205
    %v254 = vpack.c.b16 %v214, %v210
    %v255 = vpack.c.b16 %v215, %v211
    %v256 = vpack.c.b16 %v216, %v212
    %v257 = vpack.c.b16 %v217, %v213
    %v258 = vpack.c.b16 %v222, %v218
    %v259 = vpack.c.b16 %v223, %v219
    %v260 = vpack.c.b16 %v224, %v220
    %v261 = vpack.c.b16 %v225, %v221
    %v262 = vpack.c.b16 %v230, %v226
    %v263 = vpack.c.b16 %v231, %v227
    %v264 = vpack.c.b16 %v232, %v228
    %v265 = vpack.c.b16 %v233, %v229
    %298 = vmatpush.bf16.msra.mxu0 %v262
    %299 = vmatpush.bf16.msra.mxu0 %v258
    %300 = vmatpush.bf16.msra.mxu0 %v254
    %301 = vmatpush.bf16.msra.mxu0 %v250
    %302 = vmatpush.bf16.msra.mxu0 %v246
    %303 = vmatpush.bf16.msra.mxu0 %v242
    %304 = vmatpush.bf16.msra.mxu0 %v238
    %305 = vmatpush.bf16.msra.mxu0 %v234
    %306 = vmatmul.bf16.gmra.mxu0 %v95
    %v307 = vpop.f32.mrf.mxu0
    %v308 = vadd.f32 %v130, %v307
    %v309 = vpop.f32.mrf.mxu0
    %310 = vdwg.mxu0
    %311 = vmatpush.bf16.msra.mxu0 %v263
    %312 = vmatpush.bf16.msra.mxu0 %v259
    %313 = vmatpush.bf16.msra.mxu0 %v255
    %314 = vmatpush.bf16.msra.mxu0 %v251
    %315 = vmatpush.bf16.msra.mxu0 %v247
    %316 = vmatpush.bf16.msra.mxu0 %v243
    %317 = vmatpush.bf16.msra.mxu0 %v239
    %318 = vmatpush.bf16.msra.mxu0 %v235
    %319 = vmatmul.bf16.gmra.mxu0 %v95
    %v320 = vpop.f32.mrf.mxu0
    %v321 = vadd.f32 %v131, %v320
    %v322 = vpop.f32.mrf.mxu0
    %323 = vdwg.mxu0
    %324 = vmatpush.bf16.msra.mxu0 %v264
    %325 = vmatpush.bf16.msra.mxu0 %v260
    %326 = vmatpush.bf16.msra.mxu0 %v256
    %327 = vmatpush.bf16.msra.mxu0 %v252
    %328 = vmatpush.bf16.msra.mxu0 %v248
    %329 = vmatpush.bf16.msra.mxu0 %v244
    %330 = vmatpush.bf16.msra.mxu0 %v240
    %331 = vmatpush.bf16.msra.mxu0 %v236
    %332 = vmatmul.bf16.gmra.mxu0 %v95
    %v333 = vpop.f32.mrf.mxu0
    %v334 = vadd.f32 %v132, %v333
    %v335 = vpop.f32.mrf.mxu0
    %336 = vdwg.mxu0
    %337 = vmatpush.bf16.msra.mxu0 %v265
    %338 = vmatpush.bf16.msra.mxu0 %v261
    %339 = vmatpush.bf16.msra.mxu0 %v257
    %340 = vmatpush.bf16.msra.mxu0 %v253
    %341 = vmatpush.bf16.msra.mxu0 %v249
    %342 = vmatpush.bf16.msra.mxu0 %v245
    %343 = vmatpush.bf16.msra.mxu0 %v241
    %344 = vmatpush.bf16.msra.mxu0 %v237
    %345 = vmatmul.bf16.gmra.mxu0 %v95
    %v346 = vpop.f32.mrf.mxu0
    %v347 = vadd.f32 %v133, %v346
    %v348 = vpop.f32.mrf.mxu0
    %349 = vdwg.mxu0
    %v350 = vmax.f32 %v308, 0.0
    %v351 = vmax.f32 %v321, 0.0
    %v352 = vmax.f32 %v334, 0.0
    %v353 = vmax.f32 %v347, 0.0
    %v354 = vpack.c.bf16 %v350, %v350
    %v355 = vpack.c.bf16 %v351, %v351
    %v356 = vpack.c.bf16 %v352, %v352
    %v357 = vpack.c.bf16 %v353, %v353
    %v358 = vld [vmem:[#allocation4] sm:$0xff]
    %v359 = vld [vmem:[#allocation4 + $0x8] sm:$0xff]
    %v360 = vld [vmem:[#allocation4 + $0x10] sm:$0xff]
    %v361 = vld [vmem:[#allocation4 + $0x18] sm:$0xff]
    %v362 = vld [vmem:[#allocation4 + $0x20] sm:$0xff]
    %v363 = vld [vmem:[#allocation4 + $0x28] sm:$0xff]
    %v364 = vld [vmem:[#allocation4 + $0x30] sm:$0xff]
    %v365 = vld [vmem:[#allocation4 + $0x38] sm:$0xff]
    %v366 = vld [vmem:[#allocation4 + $0x40] sm:$0xff]
    %v367 = vld [vmem:[#allocation4 + $0x48] sm:$0xff]
    %v368 = vld [vmem:[#allocation4 + $0x50] sm:$0xff]
    %v369 = vld [vmem:[#allocation4 + $0x58] sm:$0xff]
    %v370 = vld [vmem:[#allocation4 + $0x60] sm:$0xff]
    %v371 = vld [vmem:[#allocation4 + $0x68] sm:$0xff]
    %v372 = vld [vmem:[#allocation4 + $0x70] sm:$0xff]
    %v373 = vld [vmem:[#allocation4 + $0x78] sm:$0xff]
    %v374 = vld [vmem:[#allocation4 + $0x80] sm:$0xff]
    %v375 = vld [vmem:[#allocation4 + $0x88] sm:$0xff]
    %v376 = vld [vmem:[#allocation4 + $0x90] sm:$0xff]
    %v377 = vld [vmem:[#allocation4 + $0x98] sm:$0xff]
    %v378 = vld [vmem:[#allocation4 + $0xa0] sm:$0xff]
    %v379 = vld [vmem:[#allocation4 + $0xa8] sm:$0xff]
    %v380 = vld [vmem:[#allocation4 + $0xb0] sm:$0xff]
    %v381 = vld [vmem:[#allocation4 + $0xb8] sm:$0xff]
    %v382 = vld [vmem:[#allocation4 + $0xc0] sm:$0xff]
    %v383 = vld [vmem:[#allocation4 + $0xc8] sm:$0xff]
    %v384 = vld [vmem:[#allocation4 + $0xd0] sm:$0xff]
    %v385 = vld [vmem:[#allocation4 + $0xd8] sm:$0xff]
    %v386 = vld [vmem:[#allocation4 + $0xe0] sm:$0xff]
    %v387 = vld [vmem:[#allocation4 + $0xe8] sm:$0xff]
    %v388 = vld [vmem:[#allocation4 + $0xf0] sm:$0xff]
    %v389 = vld [vmem:[#allocation4 + $0xf8] sm:$0xff]
    %v390 = vld [vmem:[#allocation4 + $0x100] sm:$0xff]
    %v391 = vld [vmem:[#allocation4 + $0x108] sm:$0xff]
    %v392 = vld [vmem:[#allocation4 + $0x110] sm:$0xff]
    %v393 = vld [vmem:[#allocation4 + $0x118] sm:$0xff]
    %v394 = vld [vmem:[#allocation4 + $0x120] sm:$0xff]
    %v395 = vld [vmem:[#allocation4 + $0x128] sm:$0xff]
    %v396 = vld [vmem:[#allocation4 + $0x130] sm:$0xff]
    %v397 = vld [vmem:[#allocation4 + $0x138] sm:$0xff]
    %v398 = vld [vmem:[#allocation4 + $0x140] sm:$0xff]
    %v399 = vld [vmem:[#allocation4 + $0x148] sm:$0xff]
    %v400 = vld [vmem:[#allocation4 + $0x150] sm:$0xff]
    %v401 = vld [vmem:[#allocation4 + $0x158] sm:$0xff]
    %v402 = vld [vmem:[#allocation4 + $0x160] sm:$0xff]
    %v403 = vld [vmem:[#allocation4 + $0x168] sm:$0xff]
    %v404 = vld [vmem:[#allocation4 + $0x170] sm:$0xff]
    %v405 = vld [vmem:[#allocation4 + $0x178] sm:$0xff]
    %v406 = vld [vmem:[#allocation4 + $0x180] sm:$0xff]
    %v407 = vld [vmem:[#allocation4 + $0x188] sm:$0xff]
    %v408 = vld [vmem:[#allocation4 + $0x190] sm:$0xff]
    %v409 = vld [vmem:[#allocation4 + $0x198] sm:$0xff]
    %v410 = vld [vmem:[#allocation4 + $0x1a0] sm:$0xff]
    %v411 = vld [vmem:[#allocation4 + $0x1a8] sm:$0xff]
    %v412 = vld [vmem:[#allocation4 + $0x1b0] sm:$0xff]
    %v413 = vld [vmem:[#allocation4 + $0x1b8] sm:$0xff]
    %v414 = vld [vmem:[#allocation4 + $0x1c0] sm:$0xff]
    %v415 = vld [vmem:[#allocation4 + $0x1c8] sm:$0xff]
    %v416 = vld [vmem:[#allocation4 + $0x1d0] sm:$0xff]
    %v417 = vld [vmem:[#allocation4 + $0x1d8] sm:$0xff]
    %v418 = vld [vmem:[#allocation4 + $0x1e0] sm:$0xff]
    %v419 = vld [vmem:[#allocation4 + $0x1e8] sm:$0xff]
    %v420 = vld [vmem:[#allocation4 + $0x1f0] sm:$0xff]
    %v421 = vld [vmem:[#allocation4 + $0x1f8] sm:$0xff]
    %v422 = vld [vmem:[%s4] sm:$0x3]
    %v424 = vperm.slane %v422, 0
    %v425 = vperm.slane %v422, 1
    %v492 = vunpack.c.l.b16 %v358
    %v493 = vunpack.c.h.b16 %v358
    %v494 = vunpack.c.l.b16 %v359
    %v495 = vunpack.c.h.b16 %v359
    %v496 = vunpack.c.l.b16 %v360
    %v497 = vunpack.c.h.b16 %v360
    %v498 = vunpack.c.l.b16 %v361
    %v499 = vunpack.c.h.b16 %v361
    %v500 = vunpack.c.l.b16 %v362
    %v501 = vunpack.c.h.b16 %v362
    %v502 = vunpack.c.l.b16 %v363
    %v503 = vunpack.c.h.b16 %v363
    %v504 = vunpack.c.l.b16 %v364
    %v505 = vunpack.c.h.b16 %v364
    %v506 = vunpack.c.l.b16 %v365
    %v507 = vunpack.c.h.b16 %v365
    %v508 = vunpack.c.l.b16 %v366
    %v509 = vunpack.c.h.b16 %v366
    %v510 = vunpack.c.l.b16 %v367
    %v511 = vunpack.c.h.b16 %v367
    %v512 = vunpack.c.l.b16 %v368
    %v513 = vunpack.c.h.b16 %v368
    %v514 = vunpack.c.l.b16 %v369
    %v515 = vunpack.c.h.b16 %v369
    %v516 = vunpack.c.l.b16 %v370
    %v517 = vunpack.c.h.b16 %v370
    %v518 = vunpack.c.l.b16 %v371
    %v519 = vunpack.c.h.b16 %v371
    %v520 = vunpack.c.l.b16 %v372
    %v521 = vunpack.c.h.b16 %v372
    %v522 = vunpack.c.l.b16 %v373
    %v523 = vunpack.c.h.b16 %v373
    %v524 = vunpack.c.l.b16 %v374
    %v525 = vunpack.c.h.b16 %v374
    %v526 = vunpack.c.l.b16 %v375
    %v527 = vunpack.c.h.b16 %v375
    %v528 = vunpack.c.l.b16 %v376
    %v529 = vunpack.c.h.b16 %v376
    %v530 = vunpack.c.l.b16 %v377
    %v531 = vunpack.c.h.b16 %v377
    %v532 = vunpack.c.l.b16 %v378
    %v533 = vunpack.c.h.b16 %v378
    %v534 = vunpack.c.l.b16 %v379
    %v535 = vunpack.c.h.b16 %v379
    %v536 = vunpack.c.l.b16 %v380
    %v537 = vunpack.c.h.b16 %v380
    %v538 = vunpack.c.l.b16 %v381
    %v539 = vunpack.c.h.b16 %v381
    %v540 = vunpack.c.l.b16 %v382
    %v541 = vunpack.c.h.b16 %v382
    %v542 = vunpack.c.l.b16 %v383
    %v543 = vunpack.c.h.b16 %v383
    %v544 = vunpack.c.l.b16 %v384
    %v545 = vunpack.c.h.b16 %v384
    %v546 = vunpack.c.l.b16 %v385
    %v547 = vunpack.c.h.b16 %v385
    %v548 = vunpack.c.l.b16 %v386
    %v549 = vunpack.c.h.b16 %v386
    %v550 = vunpack.c.l.b16 %v387
    %v551 = vunpack.c.h.b16 %v387
    %v552 = vunpack.c.l.b16 %v388
    %v553 = vunpack.c.h.b16 %v388
    %v554 = vunpack.c.l.b16 %v389
    %v555 = vunpack.c.h.b16 %v389
    %v556 = vunpack.c.l.b16 %v390
    %v557 = vunpack.c.h.b16 %v390
    %v558 = vunpack.c.l.b16 %v391
    %v559 = vunpack.c.h.b16 %v391
    %v560 = vunpack.c.l.b16 %v392
    %v561 = vunpack.c.h.b16 %v392
    %v562 = vunpack.c.l.b16 %v393
    %v563 = vunpack.c.h.b16 %v393
    %v564 = vunpack.c.l.b16 %v394
    %v565 = vunpack.c.h.b16 %v394
    %v566 = vunpack.c.l.b16 %v395
    %v567 = vunpack.c.h.b16 %v395
    %v568 = vunpack.c.l.b16 %v396
    %v569 = vunpack.c.h.b16 %v396
    %v570 = vunpack.c.l.b16 %v397
    %v571 = vunpack.c.h.b16 %v397
    %v572 = vunpack.c.l.b16 %v398
    %v573 = vunpack.c.h.b16 %v398
    %v574 = vunpack.c.l.b16 %v399
    %v575 = vunpack.c.h.b16 %v399
    %v576 = vunpack.c.l.b16 %v400
    %v577 = vunpack.c.h.b16 %v400
    %v578 = vunpack.c.l.b16 %v401
    %v579 = vunpack.c.h.b16 %v401
    %v580 = vunpack.c.l.b16 %v402
    %v581 = vunpack.c.h.b16 %v402
    %v582 = vunpack.c.l.b16 %v403
    %v583 = vunpack.c.h.b16 %v403
    %v584 = vunpack.c.l.b16 %v404
    %v585 = vunpack.c.h.b16 %v404
    %v586 = vunpack.c.l.b16 %v405
    %v587 = vunpack.c.h.b16 %v405
    %v588 = vunpack.c.l.b16 %v406
    %v589 = vunpack.c.h.b16 %v406
    %v590 = vunpack.c.l.b16 %v407
    %v591 = vunpack.c.h.b16 %v407
    %v592 = vunpack.c.l.b16 %v408
    %v593 = vunpack.c.h.b16 %v408
    %v594 = vunpack.c.l.b16 %v409
    %v595 = vunpack.c.h.b16 %v409
    %v596 = vunpack.c.l.b16 %v410
    %v597 = vunpack.c.h.b16 %v410
    %v598 = vunpack.c.l.b16 %v411
    %v599 = vunpack.c.h.b16 %v411
    %v600 = vunpack.c.l.b16 %v412
    %v601 = vunpack.c.h.b16 %v412
    %v602 = vunpack.c.l.b16 %v413
    %v603 = vunpack.c.h.b16 %v413
    %v604 = vunpack.c.l.b16 %v414
    %v605 = vunpack.c.h.b16 %v414
    %v606 = vunpack.c.l.b16 %v415
    %v607 = vunpack.c.h.b16 %v415
    %v608 = vunpack.c.l.b16 %v416
    %v609 = vunpack.c.h.b16 %v416
    %v610 = vunpack.c.l.b16 %v417
    %v611 = vunpack.c.h.b16 %v417
    %v612 = vunpack.c.l.b16 %v418
    %v613 = vunpack.c.h.b16 %v418
    %v614 = vunpack.c.l.b16 %v419
    %v615 = vunpack.c.h.b16 %v419
    %v616 = vunpack.c.l.b16 %v420
    %v617 = vunpack.c.h.b16 %v420
    %v618 = vunpack.c.l.b16 %v421
    %v619 = vunpack.c.h.b16 %v421
    %v620 = vpack.c.b16 %v494, %v492
    %v621 = vpack.c.b16 %v495, %v493
    %v622 = vpack.c.b16 %v498, %v496
    %v623 = vpack.c.b16 %v499, %v497
    %v624 = vpack.c.b16 %v502, %v500
    %v625 = vpack.c.b16 %v503, %v501
    %v626 = vpack.c.b16 %v506, %v504
    %v627 = vpack.c.b16 %v507, %v505
    %v628 = vpack.c.b16 %v510, %v508
    %v629 = vpack.c.b16 %v511, %v509
    %v630 = vpack.c.b16 %v514, %v512
    %v631 = vpack.c.b16 %v515, %v513
    %v632 = vpack.c.b16 %v518, %v516
    %v633 = vpack.c.b16 %v519, %v517
    %v634 = vpack.c.b16 %v522, %v520
    %v635 = vpack.c.b16 %v523, %v521
    %v636 = vpack.c.b16 %v526, %v524
    %v637 = vpack.c.b16 %v527, %v525
    %v638 = vpack.c.b16 %v530, %v528
    %v639 = vpack.c.b16 %v531, %v529
    %v640 = vpack.c.b16 %v534, %v532
    %v641 = vpack.c.b16 %v535, %v533
    %v642 = vpack.c.b16 %v538, %v536
    %v643 = vpack.c.b16 %v539, %v537
    %v644 = vpack.c.b16 %v542, %v540
    %v645 = vpack.c.b16 %v543, %v541
    %v646 = vpack.c.b16 %v546, %v544
    %v647 = vpack.c.b16 %v547, %v545
    %v648 = vpack.c.b16 %v550, %v548
    %v649 = vpack.c.b16 %v551, %v549
    %v650 = vpack.c.b16 %v554, %v552
    %v651 = vpack.c.b16 %v555, %v553
    %v652 = vpack.c.b16 %v558, %v556
    %v653 = vpack.c.b16 %v559, %v557
    %v654 = vpack.c.b16 %v562, %v560
    %v655 = vpack.c.b16 %v563, %v561
    %v656 = vpack.c.b16 %v566, %v564
    %v657 = vpack.c.b16 %v567, %v565
    %v658 = vpack.c.b16 %v570, %v568
    %v659 = vpack.c.b16 %v571, %v569
    %v660 = vpack.c.b16 %v574, %v572
    %v661 = vpack.c.b16 %v575, %v573
    %v662 = vpack.c.b16 %v578, %v576
    %v663 = vpack.c.b16 %v579, %v577
    %v664 = vpack.c.b16 %v582, %v580
    %v665 = vpack.c.b16 %v583, %v581
    %v666 = vpack.c.b16 %v586, %v584
    %v667 = vpack.c.b16 %v587, %v585
    %v668 = vpack.c.b16 %v590, %v588
    %v669 = vpack.c.b16 %v591, %v589
    %v670 = vpack.c.b16 %v594, %v592
    %v671 = vpack.c.b16 %v595, %v593
    %v672 = vpack.c.b16 %v598, %v596
    %v673 = vpack.c.b16 %v599, %v597
    %v674 = vpack.c.b16 %v602, %v600
    %v675 = vpack.c.b16 %v603, %v601
    %v676 = vpack.c.b16 %v606, %v604
    %v677 = vpack.c.b16 %v607, %v605
    %v678 = vpack.c.b16 %v610, %v608
    %v679 = vpack.c.b16 %v611, %v609
    %v680 = vpack.c.b16 %v614, %v612
    %v681 = vpack.c.b16 %v615, %v613
    %v682 = vpack.c.b16 %v618, %v616
    %v683 = vpack.c.b16 %v619, %v617
    %748 = vmatpush.bf16.msra.mxu0 %v634
    %749 = vmatpush.bf16.msra.mxu0 %v632
    %750 = vmatpush.bf16.msra.mxu0 %v630
    %751 = vmatpush.bf16.msra.mxu0 %v628
    %752 = vmatpush.bf16.msra.mxu0 %v626
    %753 = vmatpush.bf16.msra.mxu0 %v624
    %754 = vmatpush.bf16.msra.mxu0 %v622
    %755 = vmatpush.bf16.msra.mxu0 %v620
    %756 = vmatmul.bf16.gmra.mxu0 %v354
    %v757 = vpop.f32.mrf.mxu0
    %v758 = vadd.f32 %v424, %v757
    %v759 = vpop.f32.mrf.mxu0
    %760 = vdwg.mxu0
    %761 = vmatpush.bf16.msra.mxu0 %v650
    %762 = vmatpush.bf16.msra.mxu0 %v648
    %763 = vmatpush.bf16.msra.mxu0 %v646
    %764 = vmatpush.bf16.msra.mxu0 %v644
    %765 = vmatpush.bf16.msra.mxu0 %v642
    %766 = vmatpush.bf16.msra.mxu0 %v640
    %767 = vmatpush.bf16.msra.mxu0 %v638
    %768 = vmatpush.bf16.msra.mxu0 %v636
    %769 = vmatmul.bf16.gmra.mxu0 %v355
    %v770 = vpop.f32.mrf.mxu0
    %v771 = vadd.f32 %v758, %v770
    %v772 = vpop.f32.mrf.mxu0
    %773 = vdwg.mxu0
    %774 = vmatpush.bf16.msra.mxu0 %v666
    %775 = vmatpush.bf16.msra.mxu0 %v664
    %776 = vmatpush.bf16.msra.mxu0 %v662
    %777 = vmatpush.bf16.msra.mxu0 %v660
    %778 = vmatpush.bf16.msra.mxu0 %v658
    %779 = vmatpush.bf16.msra.mxu0 %v656
    %780 = vmatpush.bf16.msra.mxu0 %v654
    %781 = vmatpush.bf16.msra.mxu0 %v652
    %782 = vmatmul.bf16.gmra.mxu0 %v356
    %v783 = vpop.f32.mrf.mxu0
    %v784 = vadd.f32 %v771, %v783
    %v785 = vpop.f32.mrf.mxu0
    %786 = vdwg.mxu0
    %787 = vmatpush.bf16.msra.mxu0 %v682
    %788 = vmatpush.bf16.msra.mxu0 %v680
    %789 = vmatpush.bf16.msra.mxu0 %v678
    %790 = vmatpush.bf16.msra.mxu0 %v676
    %791 = vmatpush.bf16.msra.mxu0 %v674
    %792 = vmatpush.bf16.msra.mxu0 %v672
    %793 = vmatpush.bf16.msra.mxu0 %v670
    %794 = vmatpush.bf16.msra.mxu0 %v668
    %795 = vmatmul.bf16.gmra.mxu0 %v357
    %v796 = vpop.f32.mrf.mxu0
    %v797 = vadd.f32 %v784, %v796
    %v798 = vpop.f32.mrf.mxu0
    %799 = vdwg.mxu0
    %800 = vmatpush.bf16.msra.mxu0 %v635
    %801 = vmatpush.bf16.msra.mxu0 %v633
    %802 = vmatpush.bf16.msra.mxu0 %v631
    %803 = vmatpush.bf16.msra.mxu0 %v629
    %804 = vmatpush.bf16.msra.mxu0 %v627
    %805 = vmatpush.bf16.msra.mxu0 %v625
    %806 = vmatpush.bf16.msra.mxu0 %v623
    %807 = vmatpush.bf16.msra.mxu0 %v621
    %808 = vmatmul.bf16.gmra.mxu0 %v354
    %v809 = vpop.f32.mrf.mxu0
    %v810 = vadd.f32 %v425, %v809
    %v811 = vpop.f32.mrf.mxu0
    %812 = vdwg.mxu0
    %813 = vmatpush.bf16.msra.mxu0 %v651
    %814 = vmatpush.bf16.msra.mxu0 %v649
    %815 = vmatpush.bf16.msra.mxu0 %v647
    %816 = vmatpush.bf16.msra.mxu0 %v645
    %817 = vmatpush.bf16.msra.mxu0 %v643
    %818 = vmatpush.bf16.msra.mxu0 %v641
    %819 = vmatpush.bf16.msra.mxu0 %v639
    %820 = vmatpush.bf16.msra.mxu0 %v637
    %821 = vmatmul.bf16.gmra.mxu0 %v355
    %v822 = vpop.f32.mrf.mxu0
    %v823 = vadd.f32 %v810, %v822
    %v824 = vpop.f32.mrf.mxu0
    %825 = vdwg.mxu0
    %826 = vmatpush.bf16.msra.mxu0 %v667
    %827 = vmatpush.bf16.msra.mxu0 %v665
    %828 = vmatpush.bf16.msra.mxu0 %v663
    %829 = vmatpush.bf16.msra.mxu0 %v661
    %830 = vmatpush.bf16.msra.mxu0 %v659
    %831 = vmatpush.bf16.msra.mxu0 %v657
    %832 = vmatpush.bf16.msra.mxu0 %v655
    %833 = vmatpush.bf16.msra.mxu0 %v653
    %834 = vmatmul.bf16.gmra.mxu0 %v356
    %v835 = vpop.f32.mrf.mxu0
    %v836 = vadd.f32 %v823, %v835
    %v837 = vpop.f32.mrf.mxu0
    %838 = vdwg.mxu0
    %839 = vmatpush.bf16.msra.mxu0 %v683
    %840 = vmatpush.bf16.msra.mxu0 %v681
    %841 = vmatpush.bf16.msra.mxu0 %v679
    %842 = vmatpush.bf16.msra.mxu0 %v677
    %843 = vmatpush.bf16.msra.mxu0 %v675
    %844 = vmatpush.bf16.msra.mxu0 %v673
    %845 = vmatpush.bf16.msra.mxu0 %v671
    %846 = vmatpush.bf16.msra.mxu0 %v669
    %847 = vmatmul.bf16.gmra.mxu0 %v357
    %v848 = vpop.f32.mrf.mxu0
    %v849 = vadd.f32 %v836, %v848
    %v850 = vpop.f32.mrf.mxu0
    %851 = vdwg.mxu0
    %v852 = vmax.f32 %v797, 0.0
    %v853 = vmax.f32 %v849, 0.0
    %v854 = vpack.c.bf16 %v852, %v852
    %v855 = vpack.c.bf16 %v853, %v853
    %v856 = vld [vmem:[#allocation6] sm:$0xf]
    %v857 = vld [vmem:[#allocation6 + $0x4] sm:$0xf]
    %v858 = vld [vmem:[#allocation6 + $0x8] sm:$0xf]
    %v859 = vld [vmem:[#allocation6 + $0xc] sm:$0xf]
    %v860 = vld [vmem:[#allocation6 + $0x10] sm:$0xf]
    %v861 = vld [vmem:[#allocation6 + $0x14] sm:$0xf]
    %v862 = vld [vmem:[#allocation6 + $0x18] sm:$0xf]
    %v863 = vld [vmem:[#allocation6 + $0x1c] sm:$0xf]
    %v864 = vld [vmem:[#allocation6 + $0x20] sm:$0xf]
    %v865 = vld [vmem:[#allocation6 + $0x24] sm:$0xf]
    %v866 = vld [vmem:[#allocation6 + $0x28] sm:$0xf]
    %v867 = vld [vmem:[#allocation6 + $0x2c] sm:$0xf]
    %v868 = vld [vmem:[#allocation6 + $0x30] sm:$0xf]
    %v869 = vld [vmem:[#allocation6 + $0x34] sm:$0xf]
    %v870 = vld [vmem:[#allocation6 + $0x38] sm:$0xf]
    %v871 = vld [vmem:[#allocation6 + $0x3c] sm:$0xf]
    %v872 = vld [vmem:[#allocation6 + $0x40] sm:$0xf]
    %v873 = vld [vmem:[#allocation6 + $0x44] sm:$0xf]
    %v874 = vld [vmem:[#allocation6 + $0x48] sm:$0xf]
    %v875 = vld [vmem:[#allocation6 + $0x4c] sm:$0xf]
    %v876 = vld [vmem:[#allocation6 + $0x50] sm:$0xf]
    %v877 = vld [vmem:[#allocation6 + $0x54] sm:$0xf]
    %v878 = vld [vmem:[#allocation6 + $0x58] sm:$0xf]
    %v879 = vld [vmem:[#allocation6 + $0x5c] sm:$0xf]
    %v880 = vld [vmem:[#allocation6 + $0x60] sm:$0xf]
    %v881 = vld [vmem:[#allocation6 + $0x64] sm:$0xf]
    %v882 = vld [vmem:[#allocation6 + $0x68] sm:$0xf]
    %v883 = vld [vmem:[#allocation6 + $0x6c] sm:$0xf]
    %v884 = vld [vmem:[#allocation6 + $0x70] sm:$0xf]
    %v885 = vld [vmem:[#allocation6 + $0x74] sm:$0xf]
    %v886 = vld [vmem:[#allocation6 + $0x78] sm:$0xf]
    %v887 = vld [vmem:[#allocation6 + $0x7c] sm:$0xf]
    %v888 = vld [vmem:[%s6] sm:$0x1]
    %v890 = vperm.slane %v888, 0
    %v924 = vunpack.c.l.b16 %v856
    %v925 = vunpack.c.l.b16 %v857
    %v926 = vunpack.c.l.b16 %v858
    %v927 = vunpack.c.l.b16 %v859
    %v928 = vunpack.c.l.b16 %v860
    %v929 = vunpack.c.l.b16 %v861
    %v930 = vunpack.c.l.b16 %v862
    %v931 = vunpack.c.l.b16 %v863
    %v932 = vunpack.c.l.b16 %v864
    %v933 = vunpack.c.l.b16 %v865
    %v934 = vunpack.c.l.b16 %v866
    %v935 = vunpack.c.l.b16 %v867
    %v936 = vunpack.c.l.b16 %v868
    %v937 = vunpack.c.l.b16 %v869
    %v938 = vunpack.c.l.b16 %v870
    %v939 = vunpack.c.l.b16 %v871
    %v940 = vunpack.c.l.b16 %v872
    %v941 = vunpack.c.l.b16 %v873
    %v942 = vunpack.c.l.b16 %v874
    %v943 = vunpack.c.l.b16 %v875
    %v944 = vunpack.c.l.b16 %v876
    %v945 = vunpack.c.l.b16 %v877
    %v946 = vunpack.c.l.b16 %v878
    %v947 = vunpack.c.l.b16 %v879
    %v948 = vunpack.c.l.b16 %v880
    %v949 = vunpack.c.l.b16 %v881
    %v950 = vunpack.c.l.b16 %v882
    %v951 = vunpack.c.l.b16 %v883
    %v952 = vunpack.c.l.b16 %v884
    %v953 = vunpack.c.l.b16 %v885
    %v954 = vunpack.c.l.b16 %v886
    %v955 = vunpack.c.l.b16 %v887
    %v956 = vpack.c.b16 %v925, %v924
    %v957 = vpack.c.b16 %v927, %v926
    %v958 = vpack.c.b16 %v929, %v928
    %v959 = vpack.c.b16 %v931, %v930
    %v960 = vpack.c.b16 %v933, %v932
    %v961 = vpack.c.b16 %v935, %v934
    %v962 = vpack.c.b16 %v937, %v936
    %v963 = vpack.c.b16 %v939, %v938
    %v964 = vpack.c.b16 %v941, %v940
    %v965 = vpack.c.b16 %v943, %v942
    %v966 = vpack.c.b16 %v945, %v944
    %v967 = vpack.c.b16 %v947, %v946
    %v968 = vpack.c.b16 %v949, %v948
    %v969 = vpack.c.b16 %v951, %v950
    %v970 = vpack.c.b16 %v953, %v952
    %v971 = vpack.c.b16 %v955, %v954
    %988 = vmatpush.bf16.msra.mxu0 %v963
    %989 = vmatpush.bf16.msra.mxu0 %v962
    %990 = vmatpush.bf16.msra.mxu0 %v961
    %991 = vmatpush.bf16.msra.mxu0 %v960
    %992 = vmatpush.bf16.msra.mxu0 %v959
    %993 = vmatpush.bf16.msra.mxu0 %v958
    %994 = vmatpush.bf16.msra.mxu0 %v957
    %995 = vmatpush.bf16.msra.mxu0 %v956
    %996 = vmatmul.bf16.gmra.mxu0 %v854
    %v997 = vpop.f32.mrf.mxu0
    %v998 = vadd.f32 %v890, %v997
    %v999 = vpop.f32.mrf.mxu0
    %1000 = vdwg.mxu0
    %1001 = vmatpush.bf16.msra.mxu0 %v971
    %1002 = vmatpush.bf16.msra.mxu0 %v970
    %1003 = vmatpush.bf16.msra.mxu0 %v969
    %1004 = vmatpush.bf16.msra.mxu0 %v968
    %1005 = vmatpush.bf16.msra.mxu0 %v967
    %1006 = vmatpush.bf16.msra.mxu0 %v966
    %1007 = vmatpush.bf16.msra.mxu0 %v965
    %1008 = vmatpush.bf16.msra.mxu0 %v964
    %1009 = vmatmul.bf16.gmra.mxu0 %v855
    %v1010 = vpop.f32.mrf.mxu0
    %v1011 = vadd.f32 %v998, %v1010
    %v1012 = vpop.f32.mrf.mxu0
    %1013 = vdwg.mxu0
    %v1014 = vmax.f32 %v1011, 0.0
    %v1015 = vpack.c.bf16 %v1014, %v1014
    %v1016 = vld [vmem:[#allocation7] sm:$0xff]
    %v1017 = vld [vmem:[#allocation7 + $0x8] sm:$0xff]
    %v1018 = vld [vmem:[#allocation7 + $0x10] sm:$0xff]
    %v1019 = vld [vmem:[#allocation7 + $0x18] sm:$0xff]
    %v1020 = vld [vmem:[#allocation7 + $0x20] sm:$0xff]
    %v1021 = vld [vmem:[#allocation7 + $0x28] sm:$0xff]
    %v1022 = vld [vmem:[#allocation7 + $0x30] sm:$0xff]
    %v1023 = vld [vmem:[#allocation7 + $0x38] sm:$0xff]
    %v1024 = vld [vmem:[#allocation7 + $0x40] sm:$0xff]
    %v1025 = vld [vmem:[#allocation7 + $0x48] sm:$0xff]
    %v1026 = vld [vmem:[#allocation7 + $0x50] sm:$0xff]
    %v1027 = vld [vmem:[#allocation7 + $0x58] sm:$0xff]
    %v1028 = vld [vmem:[#allocation7 + $0x60] sm:$0xff]
    %v1029 = vld [vmem:[#allocation7 + $0x68] sm:$0xff]
    %v1030 = vld [vmem:[#allocation7 + $0x70] sm:$0xff]
    %v1031 = vld [vmem:[#allocation7 + $0x78] sm:$0xff]
    %v1032 = vld [vmem:[%s8] sm:$0x3]
    %v1034 = vperm.slane %v1032, 0
    %v1035 = vperm.slane %v1032, 1
    %v1054 = vunpack.c.l.b16 %v1016
    %v1055 = vunpack.c.h.b16 %v1016
    %v1056 = vunpack.c.l.b16 %v1017
    %v1057 = vunpack.c.h.b16 %v1017
    %v1058 = vunpack.c.l.b16 %v1018
    %v1059 = vunpack.c.h.b16 %v1018
    %v1060 = vunpack.c.l.b16 %v1019
    %v1061 = vunpack.c.h.b16 %v1019
    %v1062 = vunpack.c.l.b16 %v1020
    %v1063 = vunpack.c.h.b16 %v1020
    %v1064 = vunpack.c.l.b16 %v1021
    %v1065 = vunpack.c.h.b16 %v1021
    %v1066 = vunpack.c.l.b16 %v1022
    %v1067 = vunpack.c.h.b16 %v1022
    %v1068 = vunpack.c.l.b16 %v1023
    %v1069 = vunpack.c.h.b16 %v1023
    %v1070 = vunpack.c.l.b16 %v1024
    %v1071 = vunpack.c.h.b16 %v1024
    %v1072 = vunpack.c.l.b16 %v1025
    %v1073 = vunpack.c.h.b16 %v1025
    %v1074 = vunpack.c.l.b16 %v1026
    %v1075 = vunpack.c.h.b16 %v1026
    %v1076 = vunpack.c.l.b16 %v1027
    %v1077 = vunpack.c.h.b16 %v1027
    %v1078 = vunpack.c.l.b16 %v1028
    %v1079 = vunpack.c.h.b16 %v1028
    %v1080 = vunpack.c.l.b16 %v1029
    %v1081 = vunpack.c.h.b16 %v1029
    %v1082 = vunpack.c.l.b16 %v1030
    %v1083 = vunpack.c.h.b16 %v1030
    %v1084 = vunpack.c.l.b16 %v1031
    %v1085 = vunpack.c.h.b16 %v1031
    %v1086 = vpack.c.b16 %v1056, %v1054
    %v1087 = vpack.c.b16 %v1057, %v1055
    %v1088 = vpack.c.b16 %v1060, %v1058
    %v1089 = vpack.c.b16 %v1061, %v1059
    %v1090 = vpack.c.b16 %v1064, %v1062
    %v1091 = vpack.c.b16 %v1065, %v1063
    %v1092 = vpack.c.b16 %v1068, %v1066
    %v1093 = vpack.c.b16 %v1069, %v1067
    %v1094 = vpack.c.b16 %v1072, %v1070
    %v1095 = vpack.c.b16 %v1073, %v1071
    %v1096 = vpack.c.b16 %v1076, %v1074
    %v1097 = vpack.c.b16 %v1077, %v1075
    %v1098 = vpack.c.b16 %v1080, %v1078
    %v1099 = vpack.c.b16 %v1081, %v1079
    %v1100 = vpack.c.b16 %v1084, %v1082
    %v1101 = vpack.c.b16 %v1085, %v1083
    %1118 = vmatpush.bf16.msra.mxu0 %v1100
    %1119 = vmatpush.bf16.msra.mxu0 %v1098
    %1120 = vmatpush.bf16.msra.mxu0 %v1096
    %1121 = vmatpush.bf16.msra.mxu0 %v1094
    %1122 = vmatpush.bf16.msra.mxu0 %v1092
    %1123 = vmatpush.bf16.msra.mxu0 %v1090
    %1124 = vmatpush.bf16.msra.mxu0 %v1088
    %1125 = vmatpush.bf16.msra.mxu0 %v1086
    %1126 = vmatmul.bf16.gmra.mxu0 %v1015
    %v1127 = vpop.f32.mrf.mxu0
    %v1128 = vadd.f32 %v1034, %v1127
    %v1129 = vpop.f32.mrf.mxu0
    %1130 = vdwg.mxu0
    %1131 = vmatpush.bf16.msra.mxu0 %v1101
    %1132 = vmatpush.bf16.msra.mxu0 %v1099
    %1133 = vmatpush.bf16.msra.mxu0 %v1097
    %1134 = vmatpush.bf16.msra.mxu0 %v1095
    %1135 = vmatpush.bf16.msra.mxu0 %v1093
    %1136 = vmatpush.bf16.msra.mxu0 %v1091
    %1137 = vmatpush.bf16.msra.mxu0 %v1089
    %1138 = vmatpush.bf16.msra.mxu0 %v1087
    %1139 = vmatmul.bf16.gmra.mxu0 %v1015
    %v1140 = vpop.f32.mrf.mxu0
    %v1141 = vadd.f32 %v1035, %v1140
    %v1142 = vpop.f32.mrf.mxu0
    %1143 = vdwg.mxu0
    %v1144 = vpack.c.bf16 %v1141, %v1128
    %1145 = vst [vmem:[%s9] sm:$0xff] %v1144
    // Predicated region
    $region54: #{drl_policy_forward.1} parent=1 // pred_check
      _
    $region55: #{drl_policy_forward.1} parent=1 // pred_check_branch
      %1147 = sbr.rel (0) target = $region57
    $region56: #{drl_policy_forward.1} parent=1 // pred_region
      _
    $region57: #{drl_policy_forward.1} parent=1 // pred_fallthru
      _
    // Predicated region
    $region58: #{drl_policy_forward.1} parent=1 // pred_check
      _
    $region59: #{drl_policy_forward.1} parent=1 // pred_check_branch
      %1149 = sbr.rel (0) target = $region61
    $region60: #{drl_policy_forward.1} parent=1 // pred_region
      _
    $region61: #{drl_policy_forward.1} parent=1 // pred_fallthru
      _
    %1150 = vsyncpa [#allocation3], 1
    %1151 = vsyncpa [#allocation5], 1
    %1152 = vsyncpa [#allocation8], 1

</llo_original>
